<compile_context>
chip_gen: v7x
topology: tpu7x:2x2x1
jax: 0.10.0
libtpu: 0.0.40
codegen_flags: <defaults>
</compile_context>

<pallas_src>
import functools
import math

import jax
import jax.numpy as jnp
from jax.experimental import pallas as pl
from jax.experimental.pallas import tpu as pltpu


def _plateau_kernel(param_ref, out_ref, *, scale: float, minimum: float):
    # param_ref: (2,) f32 in SMEM   (x, y)
    # out_ref:   (1, 1) f32 in VMEM
    x = param_ref[0]
    y = param_ref[1]
    # Broadcast SMEM scalars into (1,1) vregs; all float math on the VPU/EUP.
    xv = jnp.full((1, 1), x, dtype=jnp.float32)
    yv = jnp.full((1, 1), y, dtype=jnp.float32)
    t = (xv * xv + yv * yv - 1.0) * scale          # (x^2 + y^2 - 1) * scale
    # sigmoid(t) = 0.5 * (1 + tanh(t/2)) : one EUP op, exact, overflow-free.
    out_ref[...] = 0.5 * (1.0 + jnp.tanh(0.5 * t)) - minimum


@functools.partial(jax.jit, static_argnums=(1,))
def plateau_navigation(param: jax.Array, scale: float) -> jax.Array:
    """param: shape (2,) -> scalar float32 = sigmoid((x^2+y^2-1)*scale) - sigmoid(scale)."""
    scale = float(scale)
    minimum = 1.0 / (1.0 + math.exp(scale))        # static fold (scale is static)
    out = pl.pallas_call(
        functools.partial(_plateau_kernel, scale=scale, minimum=minimum),
        out_shape=jax.ShapeDtypeStruct((1, 1), jnp.float32),
        in_specs=[pl.BlockSpec(memory_space=pltpu.MemorySpace.SMEM)],
        out_specs=pl.BlockSpec(memory_space=pltpu.MemorySpace.VMEM),
    )(param.astype(jnp.float32).reshape(2))
    return out[0, 0]


def _reference(param, scale):
    x, y = float(param[0]), float(param[1])
    output = 1.0 / (1.0 + math.exp((x * x + y * y - 1.0) * -scale))
    minimum = 1.0 / (1.0 + math.exp(scale))
    return output - minimum


if __name__ == "__main__":
    key = jax.random.PRNGKey(0)
    # deterministic init of the 2-element parameter (x, y), like tensor(x).float()
    param = jax.random.normal(key, (2,), dtype=jnp.float32) * 0.5
    scale = 10.0

    result = plateau_navigation(param, scale)
    jax.block_until_ready(result)

    ref = _reference(jax.device_get(param), scale)
    assert abs(float(result) - ref) < 1e-5, (float(result), ref)

    print("KERNEL_OK")
</pallas_src>

<mosaic_0001>
module attributes {stable_mosaic.version = 11 : i64} {
  func.func @_plateau_kernel(%arg0: memref<2xf32, #tpu.memory_space<smem>>, %arg1: memref<1x1xf32, #tpu.memory_space<vmem>>) attributes {dimension_semantics = [], scalar_prefetch = 0 : i64, scratch_operands = 0 : i64, tpu.core_type = #tpu.core_type<tc>} {
    %c0 = arith.constant 0 : index
    %0 = memref.load %arg0[%c0] : memref<2xf32, #tpu.memory_space<smem>>
    %c1 = arith.constant 1 : index
    %1 = memref.load %arg0[%c1] : memref<2xf32, #tpu.memory_space<smem>>
    %2 = vector.broadcast %0 : f32 to vector<1x1xf32>
    %3 = vector.broadcast %1 : f32 to vector<1x1xf32>
    %4 = arith.mulf %2, %2 : vector<1x1xf32>
    %5 = arith.mulf %3, %3 : vector<1x1xf32>
    %6 = arith.addf %4, %5 : vector<1x1xf32>
    %cst = arith.constant 1.000000e+00 : f32
    %7 = vector.broadcast %cst : f32 to vector<1x1xf32>
    %8 = arith.subf %6, %7 : vector<1x1xf32>
    %cst_0 = arith.constant 1.000000e+01 : f32
    %9 = vector.broadcast %cst_0 : f32 to vector<1x1xf32>
    %10 = arith.mulf %8, %9 : vector<1x1xf32>
    %cst_1 = arith.constant 5.000000e-01 : f32
    %11 = vector.broadcast %cst_1 : f32 to vector<1x1xf32>
    %12 = arith.mulf %11, %10 : vector<1x1xf32>
    %13 = math.tanh %12 : vector<1x1xf32>
    %cst_2 = arith.constant 1.000000e+00 : f32
    %14 = vector.broadcast %cst_2 : f32 to vector<1x1xf32>
    %15 = arith.addf %14, %13 : vector<1x1xf32>
    %cst_3 = arith.constant 5.000000e-01 : f32
    %16 = vector.broadcast %cst_3 : f32 to vector<1x1xf32>
    %17 = arith.mulf %16, %15 : vector<1x1xf32>
    %cst_4 = arith.constant 4.53978682E-5 : f32
    %18 = vector.broadcast %cst_4 : f32 to vector<1x1xf32>
    %19 = arith.subf %17, %18 : vector<1x1xf32>
    %c0_5 = arith.constant 0 : index
    %c0_6 = arith.constant 0 : index
    %20 = vector.load %arg1[%c0_5, %c0_6] : memref<1x1xf32, #tpu.memory_space<vmem>>, vector<1x1xf32>
    tpu.vector_store %arg1[%c0_5, %c0_6], %19 {strides = array<i32>} : memref<1x1xf32, #tpu.memory_space<vmem>>, vector<1x1xf32>,
    return
  }
}

</mosaic_0001>

<llo_original>
// kernel: plateau_navigation.1
$region0: #{plateau_navigation.1}
  #allocation0 [shape = 'u32[]', space=smem, size = 0x4, offset = 0x4, fixed_abs, tag = 'smem constant byte address 0x4 - core index']
  #allocation1 [shape = 'u32[144,128]{1,0:T(1,128)}', space=vmem, size = 0x12000, scoped, tag = 'internal scratch']
  %s0 = inlined_call_operand.hbm [shape: f32[2], index: 0, kind: input, shape index: {}]
  %s1 = inlined_call_operand.hbm [shape: f32[1,1], index: 1, kind: output, shape index: {}]
  %s2 = sld [smem:[#allocation0]]
  $region18: #{plateau_navigation.1} parent=0
    _
  %s4 = ssub.s32 1, %s2
  %s5 = scalar_select 0, %s4, %s2
  $region1: #{plateau_navigation.1} parent=0
    #allocation2 [shape = 'u8[512]{0}', space=smem, size = 0x200, scoped, tag = 'input window, operand 0, single buffered']
    #allocation3 [shape = 's32[1]{0}', space=sflag, size = 0x4, scoped, tag = 'scoped memory for plateau_navigation.1']
    #allocation4 [shape = 's32[1]{0}', space=sflag, size = 0x4, scoped, tag = 'scoped memory for plateau_navigation.1']
    #allocation5 [shape = 'u8[512]{0}', space=vmem, size = 0x400, scoped, tag = 'output window, operand 0, single buffered']
    %6 = vsyncpa [#allocation4], 0
    %7 = vsyncpa [#allocation3], 0
    // Predicated region
    $region2: #{plateau_navigation.1} parent=1 // pred_check
      _
    $region3: #{plateau_navigation.1} parent=1 // pred_check_branch
      %9 = sbr.rel (0) target = $region5
    $region4: #{plateau_navigation.1} parent=1 // pred_region
      %s11 = ssub.s32 16, 16
      %12 = vsyncadd [#allocation4], %s11
      %15 = dma.hbm_to_smem %s0, 16, [#allocation2], [#allocation4]
    $region5: #{plateau_navigation.1} parent=1 // pred_fallthru
      _
    // Predicated region
    $region6: #{plateau_navigation.1} parent=1 // pred_check
      _
    $region7: #{plateau_navigation.1} parent=1 // pred_check_branch
      %17 = sbr.rel (0) target = $region9
    $region8: #{plateau_navigation.1} parent=1 // pred_region
      %18 = dma.done [#allocation4], 16
    $region9: #{plateau_navigation.1} parent=1 // pred_fallthru
      _
    %19 = sfence
    %s20 = sld [smem:[#allocation2]]
    %s21 = sld [smem:[#allocation2 + $0x1]]
    %v22 = vstv %s20
    %v23 = vstv %s21
    %v24 = vmul.f32 %v22, %v22
    %v25 = vmul.f32 %v23, %v23
    %v26 = vadd.f32 %v24, %v25
    %v27 = vsub.f32 %v26, 1.0
    %v28 = vmul.f32 %v27, 10.0
    %v29 = vmul.f32 %v28, 0.5
    %v30 = vtanh.pop %v29
    %v31 = vadd.f32 %v30, 1.0
    %v32 = vmul.f32 %v31, 0.5
    %v33 = vsub.f32 %v32, 4.539787e-05
    %vm34 = vcmask 0
    %35 = vst.msk [vmem:[#allocation5] sm:$0x1] %vm34, %v33
    // Predicated region
    $region10: #{plateau_navigation.1} parent=1 // pred_check
      _
    $region11: #{plateau_navigation.1} parent=1 // pred_check_branch
      %37 = sbr.rel (0) target = $region13
    $region12: #{plateau_navigation.1} parent=1 // pred_region
      %s39 = ssub.s32 16, 16
      %40 = vsyncadd [#allocation3], %s39
      %s42 = sshll.u32 [#allocation5], 4
      %s43 = int_to_ptr.vmem [resolvable:$true] %s42
      %45 = dma.vmem_to_hbm [thread:$0]  %s43, 16, %s1, [#allocation3]
    $region13: #{plateau_navigation.1} parent=1 // pred_fallthru
      _
    // Predicated region
    $region14: #{plateau_navigation.1} parent=1 // pred_check
      _
    $region15: #{plateau_navigation.1} parent=1 // pred_check_branch
      %47 = sbr.rel (0) target = $region17
    $region16: #{plateau_navigation.1} parent=1 // pred_region
      %48 = dma.done [#allocation3], 16
    $region17: #{plateau_navigation.1} parent=1 // pred_fallthru
      _
    %49 = vsyncpa [#allocation3], 1
    %50 = vsyncpa [#allocation4], 1

</llo_original>
